<compile_context>
chip_gen: v5e
topology: v5e:2x2
jax: 0.10.0
libtpu: 0.0.40
codegen_flags: <defaults>
</compile_context>

<pallas_src>
import functools

import jax
import jax.numpy as jnp
from jax import lax
from jax.experimental import pallas as pl
from jax.experimental.pallas import tpu as pltpu

_LANE = 128


def _round_up(n, m):
    return ((n + m - 1) // m) * m


# Generation-aware VMEM budget (leave headroom; v7x only has 64 MiB / TensorCore).
try:
    _VMEM_LIMIT = int(pltpu.get_tpu_info().vmem_capacity_bytes * 3 // 4)
except Exception:  # pragma: no cover - fallback if hw query is unavailable
    _VMEM_LIMIT = 48 * 1024 * 1024


# ----------------------------------------------------------------------------
# Pallas kernel: one TcnResidualBlock for one (batch, time-tile) grid step
# ----------------------------------------------------------------------------
def _tcn_block_kernel(*refs, kernel_size, dilation, halo, has_downsample):
    """Refs (inputs, outputs, scratch):
       x_ref : (1, Tt, Cp)  f32   lane-padded channels-last input tile
       w1_ref: (K, Cp, Hp)  bf16  conv1 per-tap weights (weight-normed, padded)
       b1_ref: (1, Hp)      f32   conv1 bias
       w2_ref: (K, Hp, Hp)  bf16  conv2 per-tap weights
       b2_ref: (1, Hp)      f32   conv2 bias
       [wd_ref: (Cp, Hp) bf16, bd_ref: (1, Hp) f32]  only if has_downsample
       o_ref : (1, Tt, Hp)  f32
       xprev_ref: (H1, Cp)  f32   last (K-1)*d input rows of the previous time tile
       hprev_ref: (H1, Hp)  f32   last (K-1)*d conv1-output rows of the previous tile
    """
    if has_downsample:
        (x_ref, w1_ref, b1_ref, w2_ref, b2_ref, wd_ref, bd_ref,
         o_ref, xprev_ref, hprev_ref) = refs
    else:
        (x_ref, w1_ref, b1_ref, w2_ref, b2_ref,
         o_ref, xprev_ref, hprev_ref) = refs
        wd_ref = bd_ref = None

    K = kernel_size
    d = dilation
    H1 = halo                                  # (K-1)*d : per-conv receptive-field halo

    tj = pl.program_id(1)

    # time-tile 0 == causal zero padding (also resets state for every new batch row)
    @pl.when(tj == 0)
    def _():
        xprev_ref[...] = jnp.zeros_like(xprev_ref)
        hprev_ref[...] = jnp.zeros_like(hprev_ref)

    x = x_ref[0]                               # (Tt, Cp) f32
    Tt, _Cp = x.shape
    Hp = o_ref.shape[-1]

    def causal_conv_relu(h, prev, w_ref, b):
        # y[t] = relu(b + sum_k W_k . h[t - (K-1-k)*d])  with zeros for negative times
        # == weight-normed Conv1d(stride=1, padding=(K-1)*d, dilation=d) + Chomp1d + ReLU.
        if H1 > 0:
            hp = jnp.concatenate([prev, h], axis=0)        # (H1 + Tt, C)
        else:
            hp = h
        hp_bf = hp.astype(jnp.bfloat16)                    # bf16 MXU operand
        acc = jnp.zeros((Tt, Hp), jnp.float32)
        for k in range(K):                                 # K accumulating matmuls,
            tap = hp_bf[k * d:k * d + Tt, :]               # no im2col slab
            acc += jnp.dot(tap, w_ref[k],
                           preferred_element_type=jnp.float32)
        return jnp.maximum(acc + b, 0.0)                   # f32 bias + ReLU

    b1 = b1_ref[...]
    b2 = b2_ref[...]

    h1 = causal_conv_relu(x, xprev_ref[...], w1_ref, b1)   # conv1+chomp+ReLU (+dropout=id)
    h2 = causal_conv_relu(h1, hprev_ref[...], w2_ref, b2)  # conv2+chomp+ReLU (+dropout=id)

    # carry the last H1 rows for the next time tile (read-before-write order above)
    if H1 > 0:
        xprev_ref[...] = x[Tt - H1:, :]
        hprev_ref[...] = h1[Tt - H1:, :]

    if has_downsample:
        res = jnp.dot(x.astype(jnp.bfloat16), wd_ref[...],
                      preferred_element_type=jnp.float32) + bd_ref[...]
    else:
        res = x                                            # identity residual (Cp == Hp)

    o_ref[0] = jnp.maximum(h2 + res, 0.0).astype(o_ref.dtype)


# ----------------------------------------------------------------------------
# Plain-JAX glue: weight_norm + padded per-tap weight layouts
# ----------------------------------------------------------------------------
def weight_norm_weight(v, g):
    """PyTorch weight_norm (dim=0): w = g * v / ||v||, norm over (Cin, K) per out-channel."""
    norm = jnp.sqrt(jnp.sum(v * v, axis=(1, 2), keepdims=True))
    return g * v / norm


def _pad2d(a, rows, cols):
    return jnp.pad(a, ((0, rows - a.shape[0]), (0, cols - a.shape[1])))


def prepare_block_weights(raw, kernel_size):
    w1 = weight_norm_weight(raw["v1"], raw["g1"])     # (Cout, Cin, K)
    w2 = weight_norm_weight(raw["v2"], raw["g2"])     # (Cout, Cout, K)
    Cout, Cin, K = w1.shape
    assert K == kernel_size
    Cp = _round_up(Cin, _LANE)
    Hp = _round_up(Cout, _LANE)

    def per_tap(w, in_pad):                           # w: (Cout, Cin_, K)
        t = jnp.transpose(w, (2, 1, 0))               # (K, Cin_, Cout): tap k -> W[:,:,k].T
        t = jnp.pad(t, ((0, 0), (0, in_pad - t.shape[1]), (0, Hp - Cout)))
        return t.astype(jnp.bfloat16)                 # bf16 weights: half the DMA / VMEM

    w1_t = per_tap(w1, Cp)                            # (K, Cp, Hp) bf16
    w2_t = per_tap(w2, Hp)                            # (K, Hp, Hp) bf16
    b1 = _pad2d(raw["b1"].reshape(1, -1), 1, Hp).astype(jnp.float32)
    b2 = _pad2d(raw["b2"].reshape(1, -1), 1, Hp).astype(jnp.float32)

    has_downsample = raw.get("w_down", None) is not None
    if has_downsample:
        wd = _pad2d(jnp.transpose(raw["w_down"]), Cp, Hp).astype(jnp.bfloat16)  # (Cp, Hp)
        bd = _pad2d(raw["b_down"].reshape(1, -1), 1, Hp).astype(jnp.float32)
    else:
        assert Cin == Cout
        wd = None
        bd = None

    return dict(w1=w1_t, b1=b1, w2=w2_t, b2=b2, wd=wd, bd=bd,
                Cin=Cin, Cout=Cout, Cp=Cp, Hp=Hp, has_downsample=has_downsample)


def _default_time_tile(T, halo):
    # biggest "nice" tile <= 512 rows that divides T -> multiple grid steps for long
    # sequences (pipelining, bounded VMEM), full T for short ones.
    for cand in (512, 256, 128, 64, 32, 16, 8):
        if cand >= max(halo, 8) and T >= cand and T % cand == 0:
            return cand
    return T


@functools.partial(
    jax.jit,
    static_argnames=("kernel_size", "stride", "dilation", "padding",
                     "time_tile", "interpret"))
def tcn_residual_block(x_ncw, raw, *, kernel_size, stride, dilation, padding,
                       time_tile=None, interpret=False):
    """TcnResidualBlock.forward (inference).  x_ncw: (B, Cin, T) -> (B, Cout, T)."""
    assert stride == 1, "TCN residual block uses stride=1"
    assert padding == (kernel_size - 1) * dilation, "causal TCN configuration"
    B, Cin, T = x_ncw.shape
    assert T % 8 == 0, "T must be a sublane multiple (pad in the caller)"

    w = prepare_block_weights(raw, kernel_size)
    Cp, Hp, Cout = w["Cp"], w["Hp"], w["Cout"]
    has_downsample = w["has_downsample"]

    halo = (kernel_size - 1) * dilation               # per-conv receptive-field halo
    tt = _default_time_tile(T, halo) if time_tile is None else time_tile
    assert T % tt == 0 and tt >= max(halo, 1), (T, tt, halo)
    n_tt = T // tt

    # channels-last, lane-padded input slab (extra channels are zeros), f32 in HBM so the
    # residual add stays full precision; bf16 cast for the MXU happens inside the kernel.
    x = jnp.transpose(x_ncw, (0, 2, 1)).astype(jnp.float32)   # (B, T, Cin)
    x = jnp.pad(x, ((0, 0), (0, 0), (0, Cp - Cin)))           # (B, T, Cp)

    grid = (B, n_tt)

    kernel = functools.partial(
        _tcn_block_kernel, kernel_size=kernel_size, dilation=dilation,
        halo=halo, has_downsample=has_downsample)

    in_specs = [
        pl.BlockSpec((1, tt, Cp), lambda b, t: (b, t, 0)),
        pl.BlockSpec(w["w1"].shape, lambda b, t: (0, 0, 0)),
        pl.BlockSpec(w["b1"].shape, lambda b, t: (0, 0)),
        pl.BlockSpec(w["w2"].shape, lambda b, t: (0, 0, 0)),
        pl.BlockSpec(w["b2"].shape, lambda b, t: (0, 0)),
    ]
    args = [x, w["w1"], w["b1"], w["w2"], w["b2"]]
    if has_downsample:
        in_specs += [pl.BlockSpec(w["wd"].shape, lambda b, t: (0, 0)),
                     pl.BlockSpec(w["bd"].shape, lambda b, t: (0, 0))]
        args += [w["wd"], w["bd"]]

    hs = max(halo, 1)
    out = pl.pallas_call(
        kernel,
        out_shape=jax.ShapeDtypeStruct((B, T, Hp), jnp.float32),
        grid=grid,
        in_specs=in_specs,
        out_specs=pl.BlockSpec((1, tt, Hp), lambda b, t: (b, t, 0)),
        scratch_shapes=[pltpu.VMEM((hs, Cp), jnp.float32),    # x halo carry
                        pltpu.VMEM((hs, Hp), jnp.float32)],   # h1 halo carry
        compiler_params=pltpu.CompilerParams(
            dimension_semantics=("parallel", "arbitrary"),
            vmem_limit_bytes=_VMEM_LIMIT),
        interpret=interpret,
    )(*args)

    out = out[:, :, :Cout]                            # crop lane padding
    return jnp.transpose(out, (0, 2, 1))              # back to (B, Cout, T)


# ----------------------------------------------------------------------------
# Synthetic PyTorch-style parameters + pure-JAX reference (correctness check)
# ----------------------------------------------------------------------------
def init_block_params(key, n_inputs, n_outputs, kernel_size):
    ks = jax.random.split(key, 8)
    v1 = 0.01 * jax.random.normal(ks[0], (n_outputs, n_inputs, kernel_size), jnp.float32)
    g1 = 0.5 + jax.random.uniform(ks[1], (n_outputs, 1, 1), jnp.float32)
    b1 = 0.1 * jax.random.normal(ks[2], (n_outputs,), jnp.float32)
    v2 = 0.01 * jax.random.normal(ks[3], (n_outputs, n_outputs, kernel_size), jnp.float32)
    g2 = 0.5 + jax.random.uniform(ks[4], (n_outputs, 1, 1), jnp.float32)
    b2 = 0.1 * jax.random.normal(ks[5], (n_outputs,), jnp.float32)
    params = dict(v1=v1, g1=g1, b1=b1, v2=v2, g2=g2, b2=b2,
                  w_down=None, b_down=None)
    if n_inputs != n_outputs:
        params["w_down"] = 0.01 * jax.random.normal(ks[6], (n_outputs, n_inputs), jnp.float32)
        params["b_down"] = 0.1 * jax.random.normal(ks[7], (n_outputs,), jnp.float32)
    return params


def _ref_block(x_ncw, raw, *, kernel_size, stride, dilation, padding):
    w1 = weight_norm_weight(raw["v1"], raw["g1"])
    w2 = weight_norm_weight(raw["v2"], raw["g2"])

    def conv_chomp(h, wgt, b):
        y = lax.conv_general_dilated(
            h, wgt, window_strides=(stride,), padding=[(padding, padding)],
            rhs_dilation=(dilation,), dimension_numbers=("NCH", "OIH", "NCH"))
        y = y + b[None, :, None]
        return y[:, :, :y.shape[2] - padding]         # Chomp1d

    out = jax.nn.relu(conv_chomp(x_ncw, w1, raw["b1"]))
    out = jax.nn.relu(conv_chomp(out, w2, raw["b2"]))  # dropout = identity at eval
    if raw["w_down"] is not None:
        res = jnp.einsum("bct,oc->bot", x_ncw, raw["w_down"]) + raw["b_down"][None, :, None]
    else:
        res = x_ncw
    return jax.nn.relu(out + res)


# ----------------------------------------------------------------------------
if __name__ == "__main__":
    key = jax.random.PRNGKey(0)
    B, T = 2, 16
    kernel_size, stride, dilation = 3, 1, 2
    padding = (kernel_size - 1) * dilation

    # cover both residual paths: 1x1-conv downsample (4->16) and identity (16->16)
    for (n_in, n_out) in [(4, 16), (16, 16)]:
        key, kp, kx = jax.random.split(key, 3)
        raw = init_block_params(kp, n_in, n_out, kernel_size)
        x = jax.random.normal(kx, (B, n_in, T), jnp.float32)

        out = tcn_residual_block(x, raw, kernel_size=kernel_size, stride=stride,
                                 dilation=dilation, padding=padding)
        out = jax.block_until_ready(out)
        assert out.shape == (B, n_out, T), out.shape

        ref = _ref_block(x, raw, kernel_size=kernel_size, stride=stride,
                         dilation=dilation, padding=padding)
        err = float(jnp.max(jnp.abs(out - ref)))
        # bf16 MXU operands -> tolerance relaxed from 1e-4 (expected quantization error)
        assert err < 5e-2, f"max abs err {err}"

    print("KERNEL_OK")
</pallas_src>

<mosaic_0001>
module attributes {stable_mosaic.version = 11 : i64} {
  func.func @_tcn_block_kernel(%arg0: i32, %arg1: i32, %arg2: memref<1x16x128xf32, #tpu.memory_space<vmem>>, %arg3: memref<3x128x128xbf16, #tpu.memory_space<vmem>>, %arg4: memref<1x128xf32, #tpu.memory_space<vmem>>, %arg5: memref<3x128x128xbf16, #tpu.memory_space<vmem>>, %arg6: memref<1x128xf32, #tpu.memory_space<vmem>>, %arg7: memref<128x128xbf16, #tpu.memory_space<vmem>>, %arg8: memref<1x128xf32, #tpu.memory_space<vmem>>, %arg9: memref<1x16x128xf32, #tpu.memory_space<vmem>>, %arg10: memref<4x128xf32, #tpu.memory_space<vmem>>, %arg11: memref<4x128xf32, #tpu.memory_space<vmem>>) attributes {dimension_semantics = [#tpu.dimension_semantics<parallel>, #tpu.dimension_semantics<arbitrary>], iteration_bounds = array<i64: 2, 1>, scalar_prefetch = 0 : i64, scratch_operands = 2 : i64, tpu.core_type = #tpu.core_type<tc>, window_params = [{transform_indices = @transform_0, window_bounds = array<i64: 1, 16, 128>}, {pipeline_mode = #tpu.pipeline_mode<synchronous>, transform_indices = @transform_1, window_bounds = array<i64: 3, 128, 128>}, {pipeline_mode = #tpu.pipeline_mode<synchronous>, transform_indices = @transform_2, window_bounds = array<i64: 1, 128>}, {pipeline_mode = #tpu.pipeline_mode<synchronous>, transform_indices = @transform_3, window_bounds = array<i64: 3, 128, 128>}, {pipeline_mode = #tpu.pipeline_mode<synchronous>, transform_indices = @transform_4, window_bounds = array<i64: 1, 128>}, {pipeline_mode = #tpu.pipeline_mode<synchronous>, transform_indices = @transform_5, window_bounds = array<i64: 128, 128>}, {pipeline_mode = #tpu.pipeline_mode<synchronous>, transform_indices = @transform_6, window_bounds = array<i64: 1, 128>}, {transform_indices = @transform_7, window_bounds = array<i64: 1, 16, 128>}]} {
    %c0_i32 = arith.constant 0 : i32
    %0 = arith.cmpi eq, %arg1, %c0_i32 : i32
    %1 = arith.extui %0 : i1 to i32
    %c0_i32_0 = arith.constant 0 : i32
    %2 = arith.cmpi ne, %1, %c0_i32_0 : i32
    scf.if %2 {
      %cst_49 = arith.constant 0.000000e+00 : f32
      %69 = vector.broadcast %cst_49 : f32 to vector<4x128xf32>
      %c0_50 = arith.constant 0 : index
      %c0_51 = arith.constant 0 : index
      %70 = vector.load %arg10[%c0_50, %c0_51] : memref<4x128xf32, #tpu.memory_space<vmem>>, vector<4x128xf32>
      tpu.vector_store %arg10[%c0_50, %c0_51], %69 {strides = array<i32>} : memref<4x128xf32, #tpu.memory_space<vmem>>, vector<4x128xf32>,
      %cst_52 = arith.constant 0.000000e+00 : f32
      %71 = vector.broadcast %cst_52 : f32 to vector<4x128xf32>
      %c0_53 = arith.constant 0 : index
      %c0_54 = arith.constant 0 : index
      %72 = vector.load %arg11[%c0_53, %c0_54] : memref<4x128xf32, #tpu.memory_space<vmem>>, vector<4x128xf32>
      tpu.vector_store %arg11[%c0_53, %c0_54], %71 {strides = array<i32>} : memref<4x128xf32, #tpu.memory_space<vmem>>, vector<4x128xf32>,
    } else {
    }
    %c0 = arith.constant 0 : index
    %c0_1 = arith.constant 0 : index
    %c0_2 = arith.constant 0 : index
    %3 = vector.load %arg2[%c0, %c0_1, %c0_2] : memref<1x16x128xf32, #tpu.memory_space<vmem>>, vector<1x16x128xf32>
    %4 = vector.shape_cast %3 : vector<1x16x128xf32> to vector<16x128xf32>
    %c0_3 = arith.constant 0 : index
    %c0_4 = arith.constant 0 : index
    %5 = vector.load %arg4[%c0_3, %c0_4] : memref<1x128xf32, #tpu.memory_space<vmem>>, vector<1x128xf32>
    %c0_5 = arith.constant 0 : index
    %c0_6 = arith.constant 0 : index
    %6 = vector.load %arg6[%c0_5, %c0_6] : memref<1x128xf32, #tpu.memory_space<vmem>>, vector<1x128xf32>
    %c0_7 = arith.constant 0 : index
    %c0_8 = arith.constant 0 : index
    %7 = vector.load %arg10[%c0_7, %c0_8] : memref<4x128xf32, #tpu.memory_space<vmem>>, vector<4x128xf32>
    %8 = tpu.concatenate %7, %4 in 0 : vector<4x128xf32>, vector<16x128xf32> -> vector<20x128xf32>
    %9 = arith.truncf %8 : vector<20x128xf32> to vector<20x128xbf16>
    %cst = arith.constant 0.000000e+00 : f32
    %10 = vector.broadcast %cst : f32 to vector<16x128xf32>
    %11 = vector.extract_strided_slice %9 {offsets = [0, 0], sizes = [16, 128], strides = [1, 1]} : vector<20x128xbf16> to vector<16x128xbf16>
    %c0_9 = arith.constant 0 : index
    %c0_10 = arith.constant 0 : index
    %c0_11 = arith.constant 0 : index
    %12 = vector.load %arg3[%c0_9, %c0_10, %c0_11] : memref<3x128x128xbf16, #tpu.memory_space<vmem>>, vector<1x128x128xbf16>
    %13 = vector.shape_cast %12 : vector<1x128x128xbf16> to vector<128x128xbf16>
    %cst_12 = arith.constant dense<0.000000e+00> : vector<16x128xf32>
    %14 = tpu.matmul %11, %13, %cst_12 {dimension_numbers = #tpu.dot_dimension_numbers<[1], [0], [0], [1], [0, 0, 1, 1], [], []>} : vector<16x128xbf16>, vector<128x128xbf16>, vector<16x128xf32> -> vector<16x128xf32>
    %15 = arith.addf %10, %14 : vector<16x128xf32>
    %16 = vector.extract_strided_slice %9 {offsets = [2, 0], sizes = [16, 128], strides = [1, 1]} : vector<20x128xbf16> to vector<16x128xbf16>
    %c1 = arith.constant 1 : index
    %c0_13 = arith.constant 0 : index
    %c0_14 = arith.constant 0 : index
    %17 = vector.load %arg3[%c1, %c0_13, %c0_14] : memref<3x128x128xbf16, #tpu.memory_space<vmem>>, vector<1x128x128xbf16>
    %18 = vector.shape_cast %17 : vector<1x128x128xbf16> to vector<128x128xbf16>
    %cst_15 = arith.constant dense<0.000000e+00> : vector<16x128xf32>
    %19 = tpu.matmul %16, %18, %cst_15 {dimension_numbers = #tpu.dot_dimension_numbers<[1], [0], [0], [1], [0, 0, 1, 1], [], []>} : vector<16x128xbf16>, vector<128x128xbf16>, vector<16x128xf32> -> vector<16x128xf32>
    %20 = arith.addf %15, %19 : vector<16x128xf32>
    %21 = vector.extract_strided_slice %9 {offsets = [4, 0], sizes = [16, 128], strides = [1, 1]} : vector<20x128xbf16> to vector<16x128xbf16>
    %c2 = arith.constant 2 : index
    %c0_16 = arith.constant 0 : index
    %c0_17 = arith.constant 0 : index
    %22 = vector.load %arg3[%c2, %c0_16, %c0_17] : memref<3x128x128xbf16, #tpu.memory_space<vmem>>, vector<1x128x128xbf16>
    %23 = vector.shape_cast %22 : vector<1x128x128xbf16> to vector<128x128xbf16>
    %cst_18 = arith.constant dense<0.000000e+00> : vector<16x128xf32>
    %24 = tpu.matmul %21, %23, %cst_18 {dimension_numbers = #tpu.dot_dimension_numbers<[1], [0], [0], [1], [0, 0, 1, 1], [], []>} : vector<16x128xbf16>, vector<128x128xbf16>, vector<16x128xf32> -> vector<16x128xf32>
    %25 = arith.addf %20, %24 : vector<16x128xf32>
    %26 = vector.broadcast %5 : vector<1x128xf32> to vector<16x128xf32>
    %27 = arith.addf %25, %26 : vector<16x128xf32>
    %cst_19 = arith.constant 0.000000e+00 : f32
    %28 = vector.broadcast %cst_19 : f32 to vector<16x128xf32>
    %29 = arith.maximumf %27, %28 : vector<16x128xf32>
    %c0_20 = arith.constant 0 : index
    %c0_21 = arith.constant 0 : index
    %30 = vector.load %arg11[%c0_20, %c0_21] : memref<4x128xf32, #tpu.memory_space<vmem>>, vector<4x128xf32>
    %31 = tpu.concatenate %30, %29 in 0 : vector<4x128xf32>, vector<16x128xf32> -> vector<20x128xf32>
    %32 = arith.truncf %31 : vector<20x128xf32> to vector<20x128xbf16>
    %cst_22 = arith.constant 0.000000e+00 : f32
    %33 = vector.broadcast %cst_22 : f32 to vector<16x128xf32>
    %34 = vector.extract_strided_slice %32 {offsets = [0, 0], sizes = [16, 128], strides = [1, 1]} : vector<20x128xbf16> to vector<16x128xbf16>
    %c0_23 = arith.constant 0 : index
    %c0_24 = arith.constant 0 : index
    %c0_25 = arith.constant 0 : index
    %35 = vector.load %arg5[%c0_23, %c0_24, %c0_25] : memref<3x128x128xbf16, #tpu.memory_space<vmem>>, vector<1x128x128xbf16>
    %36 = vector.shape_cast %35 : vector<1x128x128xbf16> to vector<128x128xbf16>
    %cst_26 = arith.constant dense<0.000000e+00> : vector<16x128xf32>
    %37 = tpu.matmul %34, %36, %cst_26 {dimension_numbers = #tpu.dot_dimension_numbers<[1], [0], [0], [1], [0, 0, 1, 1], [], []>} : vector<16x128xbf16>, vector<128x128xbf16>, vector<16x128xf32> -> vector<16x128xf32>
    %38 = arith.addf %33, %37 : vector<16x128xf32>
    %39 = vector.extract_strided_slice %32 {offsets = [2, 0], sizes = [16, 128], strides = [1, 1]} : vector<20x128xbf16> to vector<16x128xbf16>
    %c1_27 = arith.constant 1 : index
    %c0_28 = arith.constant 0 : index
    %c0_29 = arith.constant 0 : index
    %40 = vector.load %arg5[%c1_27, %c0_28, %c0_29] : memref<3x128x128xbf16, #tpu.memory_space<vmem>>, vector<1x128x128xbf16>
    %41 = vector.shape_cast %40 : vector<1x128x128xbf16> to vector<128x128xbf16>
    %cst_30 = arith.constant dense<0.000000e+00> : vector<16x128xf32>
    %42 = tpu.matmul %39, %41, %cst_30 {dimension_numbers = #tpu.dot_dimension_numbers<[1], [0], [0], [1], [0, 0, 1, 1], [], []>} : vector<16x128xbf16>, vector<128x128xbf16>, vector<16x128xf32> -> vector<16x128xf32>
    %43 = arith.addf %38, %42 : vector<16x128xf32>
    %44 = vector.extract_strided_slice %32 {offsets = [4, 0], sizes = [16, 128], strides = [1, 1]} : vector<20x128xbf16> to vector<16x128xbf16>
    %c2_31 = arith.constant 2 : index
    %c0_32 = arith.constant 0 : index
    %c0_33 = arith.constant 0 : index
    %45 = vector.load %arg5[%c2_31, %c0_32, %c0_33] : memref<3x128x128xbf16, #tpu.memory_space<vmem>>, vector<1x128x128xbf16>
    %46 = vector.shape_cast %45 : vector<1x128x128xbf16> to vector<128x128xbf16>
    %cst_34 = arith.constant dense<0.000000e+00> : vector<16x128xf32>
    %47 = tpu.matmul %44, %46, %cst_34 {dimension_numbers = #tpu.dot_dimension_numbers<[1], [0], [0], [1], [0, 0, 1, 1], [], []>} : vector<16x128xbf16>, vector<128x128xbf16>, vector<16x128xf32> -> vector<16x128xf32>
    %48 = arith.addf %43, %47 : vector<16x128xf32>
    %49 = vector.broadcast %6 : vector<1x128xf32> to vector<16x128xf32>
    %50 = arith.addf %48, %49 : vector<16x128xf32>
    %cst_35 = arith.constant 0.000000e+00 : f32
    %51 = vector.broadcast %cst_35 : f32 to vector<16x128xf32>
    %52 = arith.maximumf %50, %51 : vector<16x128xf32>
    %53 = vector.extract_strided_slice %4 {offsets = [12, 0], sizes = [4, 128], strides = [1, 1]} : vector<16x128xf32> to vector<4x128xf32>
    %c0_36 = arith.constant 0 : index
    %c0_37 = arith.constant 0 : index
    %54 = vector.load %arg10[%c0_36, %c0_37] : memref<4x128xf32, #tpu.memory_space<vmem>>, vector<4x128xf32>
    tpu.vector_store %arg10[%c0_36, %c0_37], %53 {strides = array<i32>} : memref<4x128xf32, #tpu.memory_space<vmem>>, vector<4x128xf32>,
    %55 = vector.extract_strided_slice %29 {offsets = [12, 0], sizes = [4, 128], strides = [1, 1]} : vector<16x128xf32> to vector<4x128xf32>
    %c0_38 = arith.constant 0 : index
    %c0_39 = arith.constant 0 : index
    %56 = vector.load %arg11[%c0_38, %c0_39] : memref<4x128xf32, #tpu.memory_space<vmem>>, vector<4x128xf32>
    tpu.vector_store %arg11[%c0_38, %c0_39], %55 {strides = array<i32>} : memref<4x128xf32, #tpu.memory_space<vmem>>, vector<4x128xf32>,
    %57 = arith.truncf %4 : vector<16x128xf32> to vector<16x128xbf16>
    %c0_40 = arith.constant 0 : index
    %c0_41 = arith.constant 0 : index
    %58 = vector.load %arg7[%c0_40, %c0_41] : memref<128x128xbf16, #tpu.memory_space<vmem>>, vector<128x128xbf16>
    %cst_42 = arith.constant dense<0.000000e+00> : vector<16x128xf32>
    %59 = tpu.matmul %57, %58, %cst_42 {dimension_numbers = #tpu.dot_dimension_numbers<[1], [0], [0], [1], [0, 0, 1, 1], [], []>} : vector<16x128xbf16>, vector<128x128xbf16>, vector<16x128xf32> -> vector<16x128xf32>
    %c0_43 = arith.constant 0 : index
    %c0_44 = arith.constant 0 : index
    %60 = vector.load %arg8[%c0_43, %c0_44] : memref<1x128xf32, #tpu.memory_space<vmem>>, vector<1x128xf32>
    %61 = vector.broadcast %60 : vector<1x128xf32> to vector<16x128xf32>
    %62 = arith.addf %59, %61 : vector<16x128xf32>
    %63 = arith.addf %52, %62 : vector<16x128xf32>
    %cst_45 = arith.constant 0.000000e+00 : f32
    %64 = vector.broadcast %cst_45 : f32 to vector<16x128xf32>
    %65 = arith.maximumf %63, %64 : vector<16x128xf32>
    %c0_46 = arith.constant 0 : index
    %c0_47 = arith.constant 0 : index
    %c0_48 = arith.constant 0 : index
    %66 = vector.load %arg9[%c0_46, %c0_47, %c0_48] : memref<1x16x128xf32, #tpu.memory_space<vmem>>, vector<1x16x128xf32>
    %67 = vector.shape_cast %66 : vector<1x16x128xf32> to vector<16x128xf32>
    %68 = vector.shape_cast %65 : vector<16x128xf32> to vector<1x16x128xf32>
    tpu.vector_store %arg9[%c0_46, %c0_47, %c0_48], %68 {strides = array<i32>} : memref<1x16x128xf32, #tpu.memory_space<vmem>>, vector<1x16x128xf32>,
    return
  }
  func.func @transform_0(%arg0: i32, %arg1: i32) -> (i32, i32, i32) {
    %c0_i32 = arith.constant 0 : i32
    %c0_i32_0 = arith.constant 0 : i32
    return %arg0, %arg1, %c0_i32 : i32, i32, i32
  }
  func.func @transform_1(%arg0: i32, %arg1: i32) -> (i32, i32, i32) {
    %c0_i32 = arith.constant 0 : i32
    %c0_i32_0 = arith.constant 0 : i32
    %c0_i32_1 = arith.constant 0 : i32
    %c0_i32_2 = arith.constant 0 : i32
    return %c0_i32, %c0_i32_0, %c0_i32_1 : i32, i32, i32
  }
  func.func @transform_2(%arg0: i32, %arg1: i32) -> (i32, i32) {
    %c0_i32 = arith.constant 0 : i32
    %c0_i32_0 = arith.constant 0 : i32
    %c0_i32_1 = arith.constant 0 : i32
    return %c0_i32, %c0_i32_0 : i32, i32
  }
  func.func @transform_3(%arg0: i32, %arg1: i32) -> (i32, i32, i32) {
    %c0_i32 = arith.constant 0 : i32
    %c0_i32_0 = arith.constant 0 : i32
    %c0_i32_1 = arith.constant 0 : i32
    %c0_i32_2 = arith.constant 0 : i32
    return %c0_i32, %c0_i32_0, %c0_i32_1 : i32, i32, i32
  }
  func.func @transform_4(%arg0: i32, %arg1: i32) -> (i32, i32) {
    %c0_i32 = arith.constant 0 : i32
    %c0_i32_0 = arith.constant 0 : i32
    %c0_i32_1 = arith.constant 0 : i32
    return %c0_i32, %c0_i32_0 : i32, i32
  }
  func.func @transform_5(%arg0: i32, %arg1: i32) -> (i32, i32) {
    %c0_i32 = arith.constant 0 : i32
    %c0_i32_0 = arith.constant 0 : i32
    %c0_i32_1 = arith.constant 0 : i32
    return %c0_i32, %c0_i32_0 : i32, i32
  }
  func.func @transform_6(%arg0: i32, %arg1: i32) -> (i32, i32) {
    %c0_i32 = arith.constant 0 : i32
    %c0_i32_0 = arith.constant 0 : i32
    %c0_i32_1 = arith.constant 0 : i32
    return %c0_i32, %c0_i32_0 : i32, i32
  }
  func.func @transform_7(%arg0: i32, %arg1: i32) -> (i32, i32, i32) {
    %c0_i32 = arith.constant 0 : i32
    %c0_i32_0 = arith.constant 0 : i32
    return %arg0, %arg1, %c0_i32 : i32, i32, i32
  }
}

</mosaic_0001>

<llo_original>
// kernel: tcn_residual_block.1
$region0: #{tcn_residual_block.1}
  #allocation0 [shape = 'u32[]', space=smem, size = 0x4, offset = 0x4, fixed_abs, tag = 'smem constant byte address 0x4 - core index']
  #allocation1 [shape = 'u32[72,128]{1,0:T(1,128)}', space=vmem, size = 0x9000, scoped, tag = 'internal scratch']
  #allocation2 [shape = 'f32[4,128]{1,0:T(4,128)}', space=vmem, size = 0x800, scoped, tag = 'scratch operand']
  #allocation3 [shape = 'f32[4,128]{1,0:T(4,128)}', space=vmem, size = 0x800, scoped, tag = 'scratch operand']
  %s0 = inlined_call_operand.vmem [shape: f32[2,16,128], index: 0, kind: input, shape index: {}]
  %s1 = inlined_call_operand.vmem [shape: bf16[3,128,128], index: 1, kind: input, shape index: {}]
  %s2 = inlined_call_operand.vmem [shape: f32[1,128], index: 2, kind: input, shape index: {}]
  %s3 = inlined_call_operand.vmem [shape: bf16[3,128,128], index: 3, kind: input, shape index: {}]
  %s4 = inlined_call_operand.vmem [shape: f32[1,128], index: 4, kind: input, shape index: {}]
  %s5 = inlined_call_operand.vmem [shape: bf16[128,128], index: 5, kind: input, shape index: {}]
  %s6 = inlined_call_operand.vmem [shape: f32[1,128], index: 6, kind: input, shape index: {}]
  %s7 = inlined_call_operand.vmem [shape: f32[2,16,128], index: 7, kind: output, shape index: {}]
  %s8 = sld [smem:[#allocation0]]
  $region65: #{tcn_residual_block.1} parent=0
    _
  %s10 = ssub.s32 1, %s8
  %s11 = scalar_select 0, %s10, %s8
  loop: start=0, step=1, limit=4
  $region2: #{tcn_residual_block.1} parent=0 // loop_pre_header
    _
  $region3: #{tcn_residual_block.1} parent=0 // loop_header
    %s13 = sphi 0, %s17
    %p14 = scmp.ge.s32.totalorder %s13, 4
    %s20 = sphi 0, %s32
    %s21 = sphi 0, %s28
    %s22 = sphi 0, %s20
    %s23 = sphi 0, %s21
    %s24 = sphi 0, %s22
    %s25 = sphi 0, %s23
    %s37 = sphi 0, %s39
    %s40 = sphi 0, %s37
    %s41 = sphi 0, %s40
    %s57 = sphi 0, %s41
    %s61 = sphi 0, %s61
    %s63 = sphi 0, %s61
    %s64 = sphi 0, %s63
    %s78 = sphi 0, %s64
    %s82 = sphi 0, %s82
    %s84 = sphi 0, %s82
    %s85 = sphi 0, %s84
    %s99 = sphi 0, %s85
    %s103 = sphi 0, %s103
    %s105 = sphi 0, %s103
    %s106 = sphi 0, %s105
    %s120 = sphi 0, %s106
    %s124 = sphi 0, %s124
    %s126 = sphi 0, %s124
    %s127 = sphi 0, %s126
    %s141 = sphi 0, %s127
    %s145 = sphi 0, %s145
    %s147 = sphi 0, %s145
    %s148 = sphi 0, %s147
    %s162 = sphi 0, %s148
    %s166 = sphi 0, %s166
    %s168 = sphi 0, %s166
    %s169 = sphi 0, %s168
    %s183 = sphi 0, %s169
    %s191 = sphi 0, %s193
    %s194 = sphi 0, %s191
    %s195 = sphi 0, %s194
    %s211 = sphi 0, %s195
  $region4: #{tcn_residual_block.1} parent=0 // loop_header_branch
    %16 = sbr.rel (%p14) target = $region8
  $region5: #{tcn_residual_block.1} parent=0 // loop_body
    %s18 = ssub.s32 %s13, 1
    %s19 = ssub.s32 %s13, 2
    %s26 = sadd.s32 1, %s21
    %p27 = scmp.ge.s32.totalorder %s26, 1
    %s28 = scalar_select %p27, 0, %s26
    %s29 = sadd.s32 1, %s20
    %s30 = scalar_select %p27, %s29, %s20
    %p31 = scmp.ge.s32.totalorder %s30, 2
    %s32 = scalar_select %p31, 0, %s30
    %s33 = ssub.s32 %s20, %s32
    %s34 = ssub.s32 %s21, %s28
    %s35 = sor.u32 %s33, %s34
    %p36 = scmp.eq.s32.totalorder %s35, 0
    %s38 = sadd.s32 %s37, 1
    %s39 = scalar_select %p36, %s37, %s38
    %p42 = pneg %p36
    %p43 = scmp.eq.s32.totalorder %s13, 1
    %p44 = por %p42, %p43
    %p45 = scmp.ne.s32.totalorder %s37, %s40
    %p46 = scmp.eq.s32.totalorder %s13, 0
    %p47 = por %p45, %p46
    %p48 = scmp.ne.s32.totalorder %s37, %s40
    %p49 = scmp.eq.s32.totalorder %s18, 1
    %p50 = por %p48, %p49
    %p51 = scmp.ne.s32.totalorder %s40, %s41
    %p52 = scmp.eq.s32.totalorder %s18, 0
    %p53 = por %p51, %p52
    %p54 = scmp.ne.s32.totalorder %s40, %s41
    %p55 = scmp.eq.s32.totalorder %s19, 1
    %p56 = por %p54, %p55
    %p58 = scmp.ne.s32.totalorder %s41, %s57
    %p59 = scmp.eq.s32.totalorder %s19, 0
    %p60 = por %p58, %p59
    %s62 = sadd.s32 %s61, 1
    %p65 = scmp.eq.s32.totalorder %s13, 1
    %p66 = scmp.ne.s32.totalorder %s61, %s63
    %p67 = scmp.eq.s32.totalorder %s13, 0
    %p68 = por %p66, %p67
    %p69 = scmp.ne.s32.totalorder %s61, %s63
    %p70 = scmp.eq.s32.totalorder %s18, 1
    %p71 = por %p69, %p70
    %p72 = scmp.ne.s32.totalorder %s63, %s64
    %p73 = scmp.eq.s32.totalorder %s18, 0
    %p74 = por %p72, %p73
    %p75 = scmp.ne.s32.totalorder %s63, %s64
    %p76 = scmp.eq.s32.totalorder %s19, 1
    %p77 = por %p75, %p76
    %p79 = scmp.ne.s32.totalorder %s64, %s78
    %p80 = scmp.eq.s32.totalorder %s19, 0
    %p81 = por %p79, %p80
    %s83 = sadd.s32 %s82, 1
    %p86 = scmp.eq.s32.totalorder %s13, 1
    %p87 = scmp.ne.s32.totalorder %s82, %s84
    %p88 = scmp.eq.s32.totalorder %s13, 0
    %p89 = por %p87, %p88
    %p90 = scmp.ne.s32.totalorder %s82, %s84
    %p91 = scmp.eq.s32.totalorder %s18, 1
    %p92 = por %p90, %p91
    %p93 = scmp.ne.s32.totalorder %s84, %s85
    %p94 = scmp.eq.s32.totalorder %s18, 0
    %p95 = por %p93, %p94
    %p96 = scmp.ne.s32.totalorder %s84, %s85
    %p97 = scmp.eq.s32.totalorder %s19, 1
    %p98 = por %p96, %p97
    %p100 = scmp.ne.s32.totalorder %s85, %s99
    %p101 = scmp.eq.s32.totalorder %s19, 0
    %p102 = por %p100, %p101
    %s104 = sadd.s32 %s103, 1
    %p107 = scmp.eq.s32.totalorder %s13, 1
    %p108 = scmp.ne.s32.totalorder %s103, %s105
    %p109 = scmp.eq.s32.totalorder %s13, 0
    %p110 = por %p108, %p109
    %p111 = scmp.ne.s32.totalorder %s103, %s105
    %p112 = scmp.eq.s32.totalorder %s18, 1
    %p113 = por %p111, %p112
    %p114 = scmp.ne.s32.totalorder %s105, %s106
    %p115 = scmp.eq.s32.totalorder %s18, 0
    %p116 = por %p114, %p115
    %p117 = scmp.ne.s32.totalorder %s105, %s106
    %p118 = scmp.eq.s32.totalorder %s19, 1
    %p119 = por %p117, %p118
    %p121 = scmp.ne.s32.totalorder %s106, %s120
    %p122 = scmp.eq.s32.totalorder %s19, 0
    %p123 = por %p121, %p122
    %s125 = sadd.s32 %s124, 1
    %p128 = scmp.eq.s32.totalorder %s13, 1
    %p129 = scmp.ne.s32.totalorder %s124, %s126
    %p130 = scmp.eq.s32.totalorder %s13, 0
    %p131 = por %p129, %p130
    %p132 = scmp.ne.s32.totalorder %s124, %s126
    %p133 = scmp.eq.s32.totalorder %s18, 1
    %p134 = por %p132, %p133
    %p135 = scmp.ne.s32.totalorder %s126, %s127
    %p136 = scmp.eq.s32.totalorder %s18, 0
    %p137 = por %p135, %p136
    %p138 = scmp.ne.s32.totalorder %s126, %s127
    %p139 = scmp.eq.s32.totalorder %s19, 1
    %p140 = por %p138, %p139
    %p142 = scmp.ne.s32.totalorder %s127, %s141
    %p143 = scmp.eq.s32.totalorder %s19, 0
    %p144 = por %p142, %p143
    %s146 = sadd.s32 %s145, 1
    %p149 = scmp.eq.s32.totalorder %s13, 1
    %p150 = scmp.ne.s32.totalorder %s145, %s147
    %p151 = scmp.eq.s32.totalorder %s13, 0
    %p152 = por %p150, %p151
    %p153 = scmp.ne.s32.totalorder %s145, %s147
    %p154 = scmp.eq.s32.totalorder %s18, 1
    %p155 = por %p153, %p154
    %p156 = scmp.ne.s32.totalorder %s147, %s148
    %p157 = scmp.eq.s32.totalorder %s18, 0
    %p158 = por %p156, %p157
    %p159 = scmp.ne.s32.totalorder %s147, %s148
    %p160 = scmp.eq.s32.totalorder %s19, 1
    %p161 = por %p159, %p160
    %p163 = scmp.ne.s32.totalorder %s148, %s162
    %p164 = scmp.eq.s32.totalorder %s19, 0
    %p165 = por %p163, %p164
    %s167 = sadd.s32 %s166, 1
    %p170 = scmp.eq.s32.totalorder %s13, 1
    %p171 = scmp.ne.s32.totalorder %s166, %s168
    %p172 = scmp.eq.s32.totalorder %s13, 0
    %p173 = por %p171, %p172
    %p174 = scmp.ne.s32.totalorder %s166, %s168
    %p175 = scmp.eq.s32.totalorder %s18, 1
    %p176 = por %p174, %p175
    %p177 = scmp.ne.s32.totalorder %s168, %s169
    %p178 = scmp.eq.s32.totalorder %s18, 0
    %p179 = por %p177, %p178
    %p180 = scmp.ne.s32.totalorder %s168, %s169
    %p181 = scmp.eq.s32.totalorder %s19, 1
    %p182 = por %p180, %p181
    %p184 = scmp.ne.s32.totalorder %s169, %s183
    %p185 = scmp.eq.s32.totalorder %s19, 0
    %p186 = por %p184, %p185
    %s187 = ssub.s32 %s20, %s32
    %s188 = ssub.s32 %s21, %s28
    %s189 = sor.u32 %s187, %s188
    %p190 = scmp.eq.s32.totalorder %s189, 0
    %s192 = sadd.s32 %s191, 1
    %s193 = scalar_select %p190, %s191, %s192
    %p196 = pneg %p190
    %p197 = scmp.eq.s32.totalorder %s13, 1
    %p198 = por %p196, %p197
    %p199 = scmp.ne.s32.totalorder %s191, %s194
    %p200 = scmp.eq.s32.totalorder %s13, 0
    %p201 = por %p199, %p200
    %p202 = scmp.ne.s32.totalorder %s191, %s194
    %p203 = scmp.eq.s32.totalorder %s18, 1
    %p204 = por %p202, %p203
    %p205 = scmp.ne.s32.totalorder %s194, %s195
    %p206 = scmp.eq.s32.totalorder %s18, 0
    %p207 = por %p205, %p206
    %p208 = scmp.ne.s32.totalorder %s194, %s195
    %p209 = scmp.eq.s32.totalorder %s19, 1
    %p210 = por %p208, %p209
    %p212 = scmp.ne.s32.totalorder %s195, %s211
    %p213 = scmp.eq.s32.totalorder %s19, 0
    %p214 = por %p212, %p213
    %p215 = scmp.le.s32.totalorder 1, %s13
    %p216 = scmp.lt.s32.totalorder %s13, 3
    %p217 = pnand %p215, %p216
    %p218 = pneg %p217
    // Predicated region
    $region9: #{tcn_residual_block.1} parent=5 // pred_check
      _
    $region10: #{tcn_residual_block.1} parent=5 // pred_check_branch
      %220 = sbr.rel (%p217) target = $region12
    $region11: #{tcn_residual_block.1} parent=5 // pred_region
      %s221 = ssub.s32 %s13, 1
      // Predicated region
      $region13: #{tcn_residual_block.1} parent=11 // pred_check
        %p222 = pneg %p74
      $region14: #{tcn_residual_block.1} parent=11 // pred_check_branch
        %224 = sbr.rel (%p222) target = $region16
      $region15: #{tcn_residual_block.1} parent=11 // pred_region
        _
      $region16: #{tcn_residual_block.1} parent=11 // pred_fallthru
        _
      // Predicated region
      $region17: #{tcn_residual_block.1} parent=11 // pred_check
        %p225 = pneg %p95
      $region18: #{tcn_residual_block.1} parent=11 // pred_check_branch
        %227 = sbr.rel (%p225) target = $region20
      $region19: #{tcn_residual_block.1} parent=11 // pred_region
        _
      $region20: #{tcn_residual_block.1} parent=11 // pred_fallthru
        _
      // Predicated region
      $region21: #{tcn_residual_block.1} parent=11 // pred_check
        %p228 = pneg %p116
      $region22: #{tcn_residual_block.1} parent=11 // pred_check_branch
        %230 = sbr.rel (%p228) target = $region24
      $region23: #{tcn_residual_block.1} parent=11 // pred_region
        _
      $region24: #{tcn_residual_block.1} parent=11 // pred_fallthru
        _
      // Predicated region
      $region25: #{tcn_residual_block.1} parent=11 // pred_check
        %p231 = pneg %p137
      $region26: #{tcn_residual_block.1} parent=11 // pred_check_branch
        %233 = sbr.rel (%p231) target = $region28
      $region27: #{tcn_residual_block.1} parent=11 // pred_region
        _
      $region28: #{tcn_residual_block.1} parent=11 // pred_fallthru
        _
      // Predicated region
      $region29: #{tcn_residual_block.1} parent=11 // pred_check
        %p234 = pneg %p158
      $region30: #{tcn_residual_block.1} parent=11 // pred_check_branch
        %236 = sbr.rel (%p234) target = $region32
      $region31: #{tcn_residual_block.1} parent=11 // pred_region
        _
      $region32: #{tcn_residual_block.1} parent=11 // pred_fallthru
        _
      // Predicated region
      $region33: #{tcn_residual_block.1} parent=11 // pred_check
        %p237 = pneg %p179
      $region34: #{tcn_residual_block.1} parent=11 // pred_check_branch
        %239 = sbr.rel (%p237) target = $region36
      $region35: #{tcn_residual_block.1} parent=11 // pred_region
        _
      $region36: #{tcn_residual_block.1} parent=11 // pred_fallthru
        _
    $region12: #{tcn_residual_block.1} parent=5 // pred_fallthru
      _
    %p240 = scmp.lt.s32.totalorder %s13, 2
    // Predicated region
    $region37: #{tcn_residual_block.1} parent=5 // pred_check
      %p241 = pneg %p240
    $region38: #{tcn_residual_block.1} parent=5 // pred_check_branch
      %243 = sbr.rel (%p241) target = $region40
    $region39: #{tcn_residual_block.1} parent=5 // pred_region
      // Predicated region
      $region41: #{tcn_residual_block.1} parent=39 // pred_check
        %p244 = pneg %p47
      $region42: #{tcn_residual_block.1} parent=39 // pred_check_branch
        %246 = sbr.rel (%p244) target = $region44
      $region43: #{tcn_residual_block.1} parent=39 // pred_region
        %s247 = smul.u32 2, %s21
        %p248 = scmp.lt.s32.totalorder %s20, 1
        %s249 = scalar_select %p248, %s20, 1
        %p250 = scmp.lt.s32.totalorder %s247, 1
        %s251 = scalar_select %p250, %s247, 1
        %s252 = smul.addr %s249, 2
        %s253 = sadd.s32 %s251, %s252
        %s254 = smul.addr %s253, 8
        %s255 = scalar_lea.vmem %s0, %s254
        %s256 = smul.u32 2, %s21
      $region44: #{tcn_residual_block.1} parent=39 // pred_fallthru
        _
    $region40: #{tcn_residual_block.1} parent=5 // pred_fallthru
      _
    %p257 = scmp.le.s32.totalorder 1, %s13
    %p258 = scmp.lt.s32.totalorder %s13, 3
    %p259 = pnand %p257, %p258
    %p260 = pneg %p259
    // Predicated region
    $region45: #{tcn_residual_block.1} parent=5 // pred_check
      _
    $region46: #{tcn_residual_block.1} parent=5 // pred_check_branch
      %262 = sbr.rel (%p259) target = $region48
    $region47: #{tcn_residual_block.1} parent=5 // pred_region
      %s263 = ssub.s32 %s13, 1
      %s264 = smul.u32 2, %s23
      %p265 = scmp.lt.s32.totalorder %s22, 1
      %s266 = scalar_select %p265, %s22, 1
      %p267 = scmp.lt.s32.totalorder %s264, 1
      %s268 = scalar_select %p267, %s264, 1
      %s269 = smul.addr %s266, 2
      %s270 = sadd.s32 %s268, %s269
      %s271 = smul.addr %s270, 8
      %s272 = scalar_lea.vmem %s0, %s271
      %p273 = pneg %p53
      %p274 = pneg %p50
      %p275 = pneg %p74
      %p276 = pneg %p71
      %p277 = pneg %p95
      %p278 = pneg %p92
      %p279 = pneg %p116
      %p280 = pneg %p113
      %p281 = pneg %p137
      %p282 = pneg %p134
      %p283 = pneg %p158
      %p284 = pneg %p155
      %p285 = pneg %p179
      %p286 = pneg %p176
      %p287 = pneg %p207
      %p288 = pneg %p204
      %s289 = smul.u32 2, %s23
      %p290 = scmp.lt.s32.totalorder %s22, 1
      %s291 = scalar_select %p290, %s22, 1
      %p292 = scmp.lt.s32.totalorder %s289, 1
      %s293 = scalar_select %p292, %s289, 1
      %s294 = smul.addr %s291, 2
      %s295 = sadd.s32 %s293, %s294
      %s296 = smul.addr %s295, 8
      %s297 = scalar_lea.vmem %s7, %s296
      %s298 = smul.u32 2, %s23
      %p299 = scmp.lt.s32.totalorder %s22, 1
      %s300 = scalar_select %p299, %s22, 1
      %p301 = scmp.lt.s32.totalorder %s298, 1
      %s302 = scalar_select %p301, %s298, 1
      %s303 = smul.addr %s300, 2
      %s304 = sadd.s32 %s302, %s303
      %s305 = smul.addr %s304, 8
      %s306 = scalar_lea.vmem %s0, %s305
      %s307 = smul.u32 2, %s23
      %s308 = smul.u32 2, %s23
      %p309 = scmp.lt.s32.totalorder %s22, 1
      %s310 = scalar_select %p309, %s22, 1
      %p311 = scmp.lt.s32.totalorder %s308, 1
      %s312 = scalar_select %p311, %s308, 1
      %s313 = smul.addr %s310, 2
      %s314 = sadd.s32 %s312, %s313
      %s315 = smul.addr %s314, 8
      %s316 = scalar_lea.vmem %s7, %s315
      %s317 = smul.u32 2, %s23
      %p318 = scmp.eq.s32.totalorder %s23, 0
      // Predicated region
      $region49: #{tcn_residual_block.1} parent=47 // pred_check
        %p319 = pneg %p318
      $region50: #{tcn_residual_block.1} parent=47 // pred_check_branch
        %321 = sbr.rel (%p319) target = $region52
      $region51: #{tcn_residual_block.1} parent=47 // pred_region
        %322 = vst [vmem:[#allocation2] sm:$0xf] 0.0
        %323 = vst [vmem:[#allocation3] sm:$0xf] 0.0
      $region52: #{tcn_residual_block.1} parent=47 // pred_fallthru
        _
      %v324 = vld [vmem:[%s306] sm:$0xff]
      %v325 = vld [vmem:[%s306 + $0x8] sm:$0xff]
      %v326 = vld [vmem:[%s2] sm:$0x1]
      %v327 = vld [vmem:[%s4] sm:$0x1]
      %v328 = vld [vmem:[#allocation2] sm:$0xf]
      %vm331 = vcmask 1043456
      %v332 = vrot.slane %v324, 4
      %v333 = vrot.slane %v325, 4
      %v334 = vsel %vm331, %v332, %v333
      %v338 = vsel %vm331, %v328, %v332
      %v339 = vpack.c.bf16 %v338, %v338
      %v340 = vpack.c.bf16 %v334, %v334
      %v341 = vpack.c.bf16 %v333, %v333
      %v342 = vld [vmem:[%s1] sm:$0xf]
      %v343 = vld [vmem:[%s1 + $0x4] sm:$0xf]
      %v344 = vld [vmem:[%s1 + $0x8] sm:$0xf]
      %v345 = vld [vmem:[%s1 + $0xc] sm:$0xf]
      %v346 = vld [vmem:[%s1 + $0x10] sm:$0xf]
      %v347 = vld [vmem:[%s1 + $0x14] sm:$0xf]
      %v348 = vld [vmem:[%s1 + $0x18] sm:$0xf]
      %v349 = vld [vmem:[%s1 + $0x1c] sm:$0xf]
      %v350 = vld [vmem:[%s1 + $0x20] sm:$0xf]
      %v351 = vld [vmem:[%s1 + $0x24] sm:$0xf]
      %v352 = vld [vmem:[%s1 + $0x28] sm:$0xf]
      %v353 = vld [vmem:[%s1 + $0x2c] sm:$0xf]
      %v354 = vld [vmem:[%s1 + $0x30] sm:$0xf]
      %v355 = vld [vmem:[%s1 + $0x34] sm:$0xf]
      %v356 = vld [vmem:[%s1 + $0x38] sm:$0xf]
      %v357 = vld [vmem:[%s1 + $0x3c] sm:$0xf]
      %s358 = scalar_lea.vmem %s1, 64
      %v359 = vld [vmem:[%s358] sm:$0xf]
      %v360 = vld [vmem:[%s358 + $0x4] sm:$0xf]
      %v361 = vld [vmem:[%s358 + $0x8] sm:$0xf]
      %v362 = vld [vmem:[%s358 + $0xc] sm:$0xf]
      %v363 = vld [vmem:[%s358 + $0x10] sm:$0xf]
      %v364 = vld [vmem:[%s358 + $0x14] sm:$0xf]
      %v365 = vld [vmem:[%s358 + $0x18] sm:$0xf]
      %v366 = vld [vmem:[%s358 + $0x1c] sm:$0xf]
      %v367 = vld [vmem:[%s358 + $0x20] sm:$0xf]
      %v368 = vld [vmem:[%s358 + $0x24] sm:$0xf]
      %v369 = vld [vmem:[%s358 + $0x28] sm:$0xf]
      %v370 = vld [vmem:[%s358 + $0x2c] sm:$0xf]
      %v371 = vld [vmem:[%s358 + $0x30] sm:$0xf]
      %v372 = vld [vmem:[%s358 + $0x34] sm:$0xf]
      %v373 = vld [vmem:[%s358 + $0x38] sm:$0xf]
      %v374 = vld [vmem:[%s358 + $0x3c] sm:$0xf]
      %v378 = vunpack.c.l.b16 %v339
      %v379 = vunpack.c.l.b16 %v340
      %v380 = vunpack.c.l.b16 %v341
      %v381 = vpack.c.b16 %v379, %v378
      %v382 = vpack.c.b16 %v380, %v380
      %vm383 = vcmask 1046528
      %v384 = vrot.slane %v381, 1
      %v385 = vrot.slane %v382, 1
      %v386 = vsel %vm383, %v384, %v385
      %v404 = vunpack.c.l.b16 %v359
      %v405 = vunpack.c.l.b16 %v360
      %v406 = vunpack.c.l.b16 %v361
      %v407 = vunpack.c.l.b16 %v362
      %v408 = vunpack.c.l.b16 %v363
      %v409 = vunpack.c.l.b16 %v364
      %v410 = vunpack.c.l.b16 %v365
      %v411 = vunpack.c.l.b16 %v366
      %v412 = vunpack.c.l.b16 %v367
      %v413 = vunpack.c.l.b16 %v368
      %v414 = vunpack.c.l.b16 %v369
      %v415 = vunpack.c.l.b16 %v370
      %v416 = vunpack.c.l.b16 %v371
      %v417 = vunpack.c.l.b16 %v372
      %v418 = vunpack.c.l.b16 %v373
      %v419 = vunpack.c.l.b16 %v374
      %v420 = vpack.c.b16 %v405, %v404
      %v421 = vpack.c.b16 %v407, %v406
      %v422 = vpack.c.b16 %v409, %v408
      %v423 = vpack.c.b16 %v411, %v410
      %v424 = vpack.c.b16 %v413, %v412
      %v425 = vpack.c.b16 %v415, %v414
      %v426 = vpack.c.b16 %v417, %v416
      %v427 = vpack.c.b16 %v419, %v418
      %436 = vmatpush.bf16.msra.mxu0 %v427
      %437 = vmatpush.bf16.msra.mxu0 %v426
      %438 = vmatpush.bf16.msra.mxu0 %v425
      %439 = vmatpush.bf16.msra.mxu0 %v424
      %440 = vmatpush.bf16.msra.mxu0 %v423
      %441 = vmatpush.bf16.msra.mxu0 %v422
      %442 = vmatpush.bf16.msra.mxu0 %v421
      %443 = vmatpush.bf16.msra.mxu0 %v420
      %444 = vmatmul.bf16.gmra.mxu0 %v386
      %v445 = vpop.f32.mrf.mxu0
      %v446 = vadd.f32 0.0, %v445
      %v447 = vpop.f32.mrf.mxu0
      %v448 = vadd.f32 0.0, %v447
      %449 = vdwg.mxu0
      %v467 = vunpack.c.l.b16 %v342
      %v468 = vunpack.c.l.b16 %v343
      %v469 = vunpack.c.l.b16 %v344
      %v470 = vunpack.c.l.b16 %v345
      %v471 = vunpack.c.l.b16 %v346
      %v472 = vunpack.c.l.b16 %v347
      %v473 = vunpack.c.l.b16 %v348
      %v474 = vunpack.c.l.b16 %v349
      %v475 = vunpack.c.l.b16 %v350
      %v476 = vunpack.c.l.b16 %v351
      %v477 = vunpack.c.l.b16 %v352
      %v478 = vunpack.c.l.b16 %v353
      %v479 = vunpack.c.l.b16 %v354
      %v480 = vunpack.c.l.b16 %v355
      %v481 = vunpack.c.l.b16 %v356
      %v482 = vunpack.c.l.b16 %v357
      %v483 = vpack.c.b16 %v468, %v467
      %v484 = vpack.c.b16 %v470, %v469
      %v485 = vpack.c.b16 %v472, %v471
      %v486 = vpack.c.b16 %v474, %v473
      %v487 = vpack.c.b16 %v476, %v475
      %v488 = vpack.c.b16 %v478, %v477
      %v489 = vpack.c.b16 %v480, %v479
      %v490 = vpack.c.b16 %v482, %v481
      %499 = vmatpush.bf16.msra.mxu0 %v490
      %500 = vmatpush.bf16.msra.mxu0 %v489
      %501 = vmatpush.bf16.msra.mxu0 %v488
      %502 = vmatpush.bf16.msra.mxu0 %v487
      %503 = vmatpush.bf16.msra.mxu0 %v486
      %504 = vmatpush.bf16.msra.mxu0 %v485
      %505 = vmatpush.bf16.msra.mxu0 %v484
      %506 = vmatpush.bf16.msra.mxu0 %v483
      %507 = vmatmul.bf16.gmra.mxu0 %v381
      %v508 = vpop.f32.mrf.mxu0
      %v509 = vadd.f32 %v446, %v508
      %v510 = vpop.f32.mrf.mxu0
      %v511 = vadd.f32 %v448, %v510
      %512 = vdwg.mxu0
      %s513 = scalar_lea.vmem %s1, 128
      %v514 = vld [vmem:[%s513] sm:$0xf]
      %v515 = vld [vmem:[%s513 + $0x4] sm:$0xf]
      %v516 = vld [vmem:[%s513 + $0x8] sm:$0xf]
      %v517 = vld [vmem:[%s513 + $0xc] sm:$0xf]
      %v518 = vld [vmem:[%s513 + $0x10] sm:$0xf]
      %v519 = vld [vmem:[%s513 + $0x14] sm:$0xf]
      %v520 = vld [vmem:[%s513 + $0x18] sm:$0xf]
      %v521 = vld [vmem:[%s513 + $0x1c] sm:$0xf]
      %v522 = vld [vmem:[%s513 + $0x20] sm:$0xf]
      %v523 = vld [vmem:[%s513 + $0x24] sm:$0xf]
      %v524 = vld [vmem:[%s513 + $0x28] sm:$0xf]
      %v525 = vld [vmem:[%s513 + $0x2c] sm:$0xf]
      %v526 = vld [vmem:[%s513 + $0x30] sm:$0xf]
      %v527 = vld [vmem:[%s513 + $0x34] sm:$0xf]
      %v528 = vld [vmem:[%s513 + $0x38] sm:$0xf]
      %v529 = vld [vmem:[%s513 + $0x3c] sm:$0xf]
      %vm530 = vcmask 1045504
      %v531 = vrot.slane %v381, 2
      %v532 = vrot.slane %v382, 2
      %v533 = vsel %vm530, %v531, %v532
      %v551 = vunpack.c.l.b16 %v514
      %v552 = vunpack.c.l.b16 %v515
      %v553 = vunpack.c.l.b16 %v516
      %v554 = vunpack.c.l.b16 %v517
      %v555 = vunpack.c.l.b16 %v518
      %v556 = vunpack.c.l.b16 %v519
      %v557 = vunpack.c.l.b16 %v520
      %v558 = vunpack.c.l.b16 %v521
      %v559 = vunpack.c.l.b16 %v522
      %v560 = vunpack.c.l.b16 %v523
      %v561 = vunpack.c.l.b16 %v524
      %v562 = vunpack.c.l.b16 %v525
      %v563 = vunpack.c.l.b16 %v526
      %v564 = vunpack.c.l.b16 %v527
      %v565 = vunpack.c.l.b16 %v528
      %v566 = vunpack.c.l.b16 %v529
      %v567 = vpack.c.b16 %v552, %v551
      %v568 = vpack.c.b16 %v554, %v553
      %v569 = vpack.c.b16 %v556, %v555
      %v570 = vpack.c.b16 %v558, %v557
      %v571 = vpack.c.b16 %v560, %v559
      %v572 = vpack.c.b16 %v562, %v561
      %v573 = vpack.c.b16 %v564, %v563
      %v574 = vpack.c.b16 %v566, %v565
      %583 = vmatpush.bf16.msra.mxu0 %v574
      %584 = vmatpush.bf16.msra.mxu0 %v573
      %585 = vmatpush.bf16.msra.mxu0 %v572
      %586 = vmatpush.bf16.msra.mxu0 %v571
      %587 = vmatpush.bf16.msra.mxu0 %v570
      %588 = vmatpush.bf16.msra.mxu0 %v569
      %589 = vmatpush.bf16.msra.mxu0 %v568
      %590 = vmatpush.bf16.msra.mxu0 %v567
      %591 = vmatmul.bf16.gmra.mxu0 %v533
      %v592 = vpop.f32.mrf.mxu0
      %v593 = vadd.f32 0.0, %v592
      %v594 = vpop.f32.mrf.mxu0
      %v595 = vadd.f32 0.0, %v594
      %596 = vdwg.mxu0
      %v597 = vadd.f32 %v509, %v593
      %v598 = vadd.f32 %v511, %v595
      %v600 = vperm.slane %v326, 0
      %v602 = vadd.f32 %v597, %v600
      %v603 = vadd.f32 %v598, %v600
      %v604 = vmax.f32 %v602, 0.0
      %v605 = vmax.f32 %v603, 0.0
      %v606 = vld [vmem:[#allocation3] sm:$0xf]
      %v609 = vrot.slane %v604, 4
      %v610 = vrot.slane %v605, 4
      %v611 = vsel %vm331, %v609, %v610
      %v615 = vsel %vm331, %v606, %v609
      %v616 = vpack.c.bf16 %v615, %v615
      %v617 = vpack.c.bf16 %v611, %v611
      %v618 = vpack.c.bf16 %v610, %v610
      %v619 = vld [vmem:[%s3] sm:$0xf]
      %v620 = vld [vmem:[%s3 + $0x4] sm:$0xf]
      %v621 = vld [vmem:[%s3 + $0x8] sm:$0xf]
      %v622 = vld [vmem:[%s3 + $0xc] sm:$0xf]
      %v623 = vld [vmem:[%s3 + $0x10] sm:$0xf]
      %v624 = vld [vmem:[%s3 + $0x14] sm:$0xf]
      %v625 = vld [vmem:[%s3 + $0x18] sm:$0xf]
      %v626 = vld [vmem:[%s3 + $0x1c] sm:$0xf]
      %v627 = vld [vmem:[%s3 + $0x20] sm:$0xf]
      %v628 = vld [vmem:[%s3 + $0x24] sm:$0xf]
      %v629 = vld [vmem:[%s3 + $0x28] sm:$0xf]
      %v630 = vld [vmem:[%s3 + $0x2c] sm:$0xf]
      %v631 = vld [vmem:[%s3 + $0x30] sm:$0xf]
      %v632 = vld [vmem:[%s3 + $0x34] sm:$0xf]
      %v633 = vld [vmem:[%s3 + $0x38] sm:$0xf]
      %v634 = vld [vmem:[%s3 + $0x3c] sm:$0xf]
      %s635 = scalar_lea.vmem %s3, 64
      %v636 = vld [vmem:[%s635] sm:$0xf]
      %v637 = vld [vmem:[%s635 + $0x4] sm:$0xf]
      %v638 = vld [vmem:[%s635 + $0x8] sm:$0xf]
      %v639 = vld [vmem:[%s635 + $0xc] sm:$0xf]
      %v640 = vld [vmem:[%s635 + $0x10] sm:$0xf]
      %v641 = vld [vmem:[%s635 + $0x14] sm:$0xf]
      %v642 = vld [vmem:[%s635 + $0x18] sm:$0xf]
      %v643 = vld [vmem:[%s635 + $0x1c] sm:$0xf]
      %v644 = vld [vmem:[%s635 + $0x20] sm:$0xf]
      %v645 = vld [vmem:[%s635 + $0x24] sm:$0xf]
      %v646 = vld [vmem:[%s635 + $0x28] sm:$0xf]
      %v647 = vld [vmem:[%s635 + $0x2c] sm:$0xf]
      %v648 = vld [vmem:[%s635 + $0x30] sm:$0xf]
      %v649 = vld [vmem:[%s635 + $0x34] sm:$0xf]
      %v650 = vld [vmem:[%s635 + $0x38] sm:$0xf]
      %v651 = vld [vmem:[%s635 + $0x3c] sm:$0xf]
      %v655 = vunpack.c.l.b16 %v616
      %v656 = vunpack.c.l.b16 %v617
      %v657 = vunpack.c.l.b16 %v618
      %v658 = vpack.c.b16 %v656, %v655
      %v659 = vpack.c.b16 %v657, %v657
      %v660 = vrot.slane %v658, 1
      %v661 = vrot.slane %v659, 1
      %v662 = vsel %vm383, %v660, %v661
      %v680 = vunpack.c.l.b16 %v636
      %v681 = vunpack.c.l.b16 %v637
      %v682 = vunpack.c.l.b16 %v638
      %v683 = vunpack.c.l.b16 %v639
      %v684 = vunpack.c.l.b16 %v640
      %v685 = vunpack.c.l.b16 %v641
      %v686 = vunpack.c.l.b16 %v642
      %v687 = vunpack.c.l.b16 %v643
      %v688 = vunpack.c.l.b16 %v644
      %v689 = vunpack.c.l.b16 %v645
      %v690 = vunpack.c.l.b16 %v646
      %v691 = vunpack.c.l.b16 %v647
      %v692 = vunpack.c.l.b16 %v648
      %v693 = vunpack.c.l.b16 %v649
      %v694 = vunpack.c.l.b16 %v650
      %v695 = vunpack.c.l.b16 %v651
      %v696 = vpack.c.b16 %v681, %v680
      %v697 = vpack.c.b16 %v683, %v682
      %v698 = vpack.c.b16 %v685, %v684
      %v699 = vpack.c.b16 %v687, %v686
      %v700 = vpack.c.b16 %v689, %v688
      %v701 = vpack.c.b16 %v691, %v690
      %v702 = vpack.c.b16 %v693, %v692
      %v703 = vpack.c.b16 %v695, %v694
      %712 = vmatpush.bf16.msra.mxu0 %v703
      %713 = vmatpush.bf16.msra.mxu0 %v702
      %714 = vmatpush.bf16.msra.mxu0 %v701
      %715 = vmatpush.bf16.msra.mxu0 %v700
      %716 = vmatpush.bf16.msra.mxu0 %v699
      %717 = vmatpush.bf16.msra.mxu0 %v698
      %718 = vmatpush.bf16.msra.mxu0 %v697
      %719 = vmatpush.bf16.msra.mxu0 %v696
      %720 = vmatmul.bf16.gmra.mxu0 %v662
      %v721 = vpop.f32.mrf.mxu0
      %v722 = vadd.f32 0.0, %v721
      %v723 = vpop.f32.mrf.mxu0
      %v724 = vadd.f32 0.0, %v723
      %725 = vdwg.mxu0
      %v743 = vunpack.c.l.b16 %v619
      %v744 = vunpack.c.l.b16 %v620
      %v745 = vunpack.c.l.b16 %v621
      %v746 = vunpack.c.l.b16 %v622
      %v747 = vunpack.c.l.b16 %v623
      %v748 = vunpack.c.l.b16 %v624
      %v749 = vunpack.c.l.b16 %v625
      %v750 = vunpack.c.l.b16 %v626
      %v751 = vunpack.c.l.b16 %v627
      %v752 = vunpack.c.l.b16 %v628
      %v753 = vunpack.c.l.b16 %v629
      %v754 = vunpack.c.l.b16 %v630
      %v755 = vunpack.c.l.b16 %v631
      %v756 = vunpack.c.l.b16 %v632
      %v757 = vunpack.c.l.b16 %v633
      %v758 = vunpack.c.l.b16 %v634
      %v759 = vpack.c.b16 %v744, %v743
      %v760 = vpack.c.b16 %v746, %v745
      %v761 = vpack.c.b16 %v748, %v747
      %v762 = vpack.c.b16 %v750, %v749
      %v763 = vpack.c.b16 %v752, %v751
      %v764 = vpack.c.b16 %v754, %v753
      %v765 = vpack.c.b16 %v756, %v755
      %v766 = vpack.c.b16 %v758, %v757
      %775 = vmatpush.bf16.msra.mxu0 %v766
      %776 = vmatpush.bf16.msra.mxu0 %v765
      %777 = vmatpush.bf16.msra.mxu0 %v764
      %778 = vmatpush.bf16.msra.mxu0 %v763
      %779 = vmatpush.bf16.msra.mxu0 %v762
      %780 = vmatpush.bf16.msra.mxu0 %v761
      %781 = vmatpush.bf16.msra.mxu0 %v760
      %782 = vmatpush.bf16.msra.mxu0 %v759
      %783 = vmatmul.bf16.gmra.mxu0 %v658
      %v784 = vpop.f32.mrf.mxu0
      %v785 = vadd.f32 %v722, %v784
      %v786 = vpop.f32.mrf.mxu0
      %v787 = vadd.f32 %v724, %v786
      %788 = vdwg.mxu0
      %s789 = scalar_lea.vmem %s3, 128
      %v790 = vld [vmem:[%s789] sm:$0xf]
      %v791 = vld [vmem:[%s789 + $0x4] sm:$0xf]
      %v792 = vld [vmem:[%s789 + $0x8] sm:$0xf]
      %v793 = vld [vmem:[%s789 + $0xc] sm:$0xf]
      %v794 = vld [vmem:[%s789 + $0x10] sm:$0xf]
      %v795 = vld [vmem:[%s789 + $0x14] sm:$0xf]
      %v796 = vld [vmem:[%s789 + $0x18] sm:$0xf]
      %v797 = vld [vmem:[%s789 + $0x1c] sm:$0xf]
      %v798 = vld [vmem:[%s789 + $0x20] sm:$0xf]
      %v799 = vld [vmem:[%s789 + $0x24] sm:$0xf]
      %v800 = vld [vmem:[%s789 + $0x28] sm:$0xf]
      %v801 = vld [vmem:[%s789 + $0x2c] sm:$0xf]
      %v802 = vld [vmem:[%s789 + $0x30] sm:$0xf]
      %v803 = vld [vmem:[%s789 + $0x34] sm:$0xf]
      %v804 = vld [vmem:[%s789 + $0x38] sm:$0xf]
      %v805 = vld [vmem:[%s789 + $0x3c] sm:$0xf]
      %v806 = vrot.slane %v658, 2
      %v807 = vrot.slane %v659, 2
      %v808 = vsel %vm530, %v806, %v807
      %v826 = vunpack.c.l.b16 %v790
      %v827 = vunpack.c.l.b16 %v791
      %v828 = vunpack.c.l.b16 %v792
      %v829 = vunpack.c.l.b16 %v793
      %v830 = vunpack.c.l.b16 %v794
      %v831 = vunpack.c.l.b16 %v795
      %v832 = vunpack.c.l.b16 %v796
      %v833 = vunpack.c.l.b16 %v797
      %v834 = vunpack.c.l.b16 %v798
      %v835 = vunpack.c.l.b16 %v799
      %v836 = vunpack.c.l.b16 %v800
      %v837 = vunpack.c.l.b16 %v801
      %v838 = vunpack.c.l.b16 %v802
      %v839 = vunpack.c.l.b16 %v803
      %v840 = vunpack.c.l.b16 %v804
      %v841 = vunpack.c.l.b16 %v805
      %v842 = vpack.c.b16 %v827, %v826
      %v843 = vpack.c.b16 %v829, %v828
      %v844 = vpack.c.b16 %v831, %v830
      %v845 = vpack.c.b16 %v833, %v832
      %v846 = vpack.c.b16 %v835, %v834
      %v847 = vpack.c.b16 %v837, %v836
      %v848 = vpack.c.b16 %v839, %v838
      %v849 = vpack.c.b16 %v841, %v840
      %858 = vmatpush.bf16.msra.mxu0 %v849
      %859 = vmatpush.bf16.msra.mxu0 %v848
      %860 = vmatpush.bf16.msra.mxu0 %v847
      %861 = vmatpush.bf16.msra.mxu0 %v846
      %862 = vmatpush.bf16.msra.mxu0 %v845
      %863 = vmatpush.bf16.msra.mxu0 %v844
      %864 = vmatpush.bf16.msra.mxu0 %v843
      %865 = vmatpush.bf16.msra.mxu0 %v842
      %866 = vmatmul.bf16.gmra.mxu0 %v808
      %v867 = vpop.f32.mrf.mxu0
      %v868 = vadd.f32 0.0, %v867
      %v869 = vpop.f32.mrf.mxu0
      %v870 = vadd.f32 0.0, %v869
      %871 = vdwg.mxu0
      %v872 = vadd.f32 %v785, %v868
      %v873 = vadd.f32 %v787, %v870
      %v875 = vperm.slane %v327, 0
      %v877 = vadd.f32 %v872, %v875
      %v878 = vadd.f32 %v873, %v875
      %v879 = vmax.f32 %v877, 0.0
      %v880 = vmax.f32 %v878, 0.0
      %881 = vst [vmem:[#allocation2 - $0x4] sm:$0xf0] %v325
      %882 = vst [vmem:[#allocation3 - $0x4] sm:$0xf0] %v605
      %v883 = vpack.c.bf16 %v325, %v324
      %v884 = vld [vmem:[%s5] sm:$0xf]
      %v885 = vld [vmem:[%s5 + $0x4] sm:$0xf]
      %v886 = vld [vmem:[%s5 + $0x8] sm:$0xf]
      %v887 = vld [vmem:[%s5 + $0xc] sm:$0xf]
      %v888 = vld [vmem:[%s5 + $0x10] sm:$0xf]
      %v889 = vld [vmem:[%s5 + $0x14] sm:$0xf]
      %v890 = vld [vmem:[%s5 + $0x18] sm:$0xf]
      %v891 = vld [vmem:[%s5 + $0x1c] sm:$0xf]
      %v892 = vld [vmem:[%s5 + $0x20] sm:$0xf]
      %v893 = vld [vmem:[%s5 + $0x24] sm:$0xf]
      %v894 = vld [vmem:[%s5 + $0x28] sm:$0xf]
      %v895 = vld [vmem:[%s5 + $0x2c] sm:$0xf]
      %v896 = vld [vmem:[%s5 + $0x30] sm:$0xf]
      %v897 = vld [vmem:[%s5 + $0x34] sm:$0xf]
      %v898 = vld [vmem:[%s5 + $0x38] sm:$0xf]
      %v899 = vld [vmem:[%s5 + $0x3c] sm:$0xf]
      %v900 = vld [vmem:[%s6] sm:$0x1]
      %v902 = vperm.slane %v900, 0
      %v920 = vunpack.c.l.b16 %v884
      %v921 = vunpack.c.l.b16 %v885
      %v922 = vunpack.c.l.b16 %v886
      %v923 = vunpack.c.l.b16 %v887
      %v924 = vunpack.c.l.b16 %v888
      %v925 = vunpack.c.l.b16 %v889
      %v926 = vunpack.c.l.b16 %v890
      %v927 = vunpack.c.l.b16 %v891
      %v928 = vunpack.c.l.b16 %v892
      %v929 = vunpack.c.l.b16 %v893
      %v930 = vunpack.c.l.b16 %v894
      %v931 = vunpack.c.l.b16 %v895
      %v932 = vunpack.c.l.b16 %v896
      %v933 = vunpack.c.l.b16 %v897
      %v934 = vunpack.c.l.b16 %v898
      %v935 = vunpack.c.l.b16 %v899
      %v936 = vpack.c.b16 %v921, %v920
      %v937 = vpack.c.b16 %v923, %v922
      %v938 = vpack.c.b16 %v925, %v924
      %v939 = vpack.c.b16 %v927, %v926
      %v940 = vpack.c.b16 %v929, %v928
      %v941 = vpack.c.b16 %v931, %v930
      %v942 = vpack.c.b16 %v933, %v932
      %v943 = vpack.c.b16 %v935, %v934
      %952 = vmatpush.bf16.msra.mxu0 %v943
      %953 = vmatpush.bf16.msra.mxu0 %v942
      %954 = vmatpush.bf16.msra.mxu0 %v941
      %955 = vmatpush.bf16.msra.mxu0 %v940
      %956 = vmatpush.bf16.msra.mxu0 %v939
      %957 = vmatpush.bf16.msra.mxu0 %v938
      %958 = vmatpush.bf16.msra.mxu0 %v937
      %959 = vmatpush.bf16.msra.mxu0 %v936
      %960 = vmatmul.bf16.gmra.mxu0 %v883
      %v961 = vpop.f32.mrf.mxu0
      %v962 = vadd.f32 %v902, %v961
      %v963 = vpop.f32.mrf.mxu0
      %v964 = vadd.f32 %v902, %v963
      %965 = vdwg.mxu0
      %v966 = vadd.f32 %v879, %v962
      %v967 = vadd.f32 %v880, %v964
      %v968 = vmax.f32 %v966, 0.0
      %v969 = vmax.f32 %v967, 0.0
      %970 = vst [vmem:[%s316] sm:$0xff] %v968
      %971 = vst [vmem:[%s316 + $0x8] sm:$0xff] %v969
      %s972 = smul.u32 2, %s23
      %p973 = scmp.lt.s32.totalorder %s22, 1
      %s974 = scalar_select %p973, %s22, 1
      %p975 = scmp.lt.s32.totalorder %s972, 1
      %s976 = scalar_select %p975, %s972, 1
      %s977 = smul.addr %s974, 2
      %s978 = sadd.s32 %s976, %s977
      %s979 = smul.addr %s978, 8
      %s980 = scalar_lea.vmem %s7, %s979
      // Predicated region
      $region53: #{tcn_residual_block.1} parent=47 // pred_check
        %p981 = pneg %p204
      $region54: #{tcn_residual_block.1} parent=47 // pred_check_branch
        %983 = sbr.rel (%p981) target = $region56
      $region55: #{tcn_residual_block.1} parent=47 // pred_region
        %s984 = smul.u32 2, %s23
      $region56: #{tcn_residual_block.1} parent=47 // pred_fallthru
        _
    $region48: #{tcn_residual_block.1} parent=5 // pred_fallthru
      _
    %p985 = scmp.le.s32.totalorder 2, %s13
    // Predicated region
    $region57: #{tcn_residual_block.1} parent=5 // pred_check
      %p986 = pneg %p985
    $region58: #{tcn_residual_block.1} parent=5 // pred_check_branch
      %988 = sbr.rel (%p986) target = $region60
    $region59: #{tcn_residual_block.1} parent=5 // pred_region
      %s989 = ssub.s32 %s13, 2
      // Predicated region
      $region61: #{tcn_residual_block.1} parent=59 // pred_check
        %p990 = pneg %p210
      $region62: #{tcn_residual_block.1} parent=59 // pred_check_branch
        %992 = sbr.rel (%p990) target = $region64
      $region63: #{tcn_residual_block.1} parent=59 // pred_region
        %s993 = smul.u32 2, %s25
        %p994 = scmp.lt.s32.totalorder %s24, 1
        %s995 = scalar_select %p994, %s24, 1
        %p996 = scmp.lt.s32.totalorder %s993, 1
        %s997 = scalar_select %p996, %s993, 1
        %s998 = smul.addr %s995, 2
        %s999 = sadd.s32 %s997, %s998
        %s1000 = smul.addr %s999, 8
        %s1001 = scalar_lea.vmem %s7, %s1000
      $region64: #{tcn_residual_block.1} parent=59 // pred_fallthru
        _
    $region60: #{tcn_residual_block.1} parent=5 // pred_fallthru
      _
  $region6: #{tcn_residual_block.1} parent=0 // loop_footer
    %s17 = sadd.s32 1, %s13
  $region7: #{tcn_residual_block.1} parent=0 // loop_footer_branch
    %12 = sbr.rel target = $region3
  $region8: #{tcn_residual_block.1} parent=0 // loop_exit
    _

</llo_original>
